<compile_context>
chip_gen: v5e
topology: v5e:2x2
jax: 0.10.0
libtpu: 0.0.40
codegen_flags: <defaults>
</compile_context>

<pallas_src>
import functools

import jax
import jax.numpy as jnp
from jax import lax
from jax.experimental import pallas as pl
from jax.experimental.pallas import tpu as pltpu


def _pose_loss_kernel(pred_ref, truth_ref, out_ref, *, epsilon, alpha,
                      n_valid, tile_n, distance_metric, mode):
    # Tiles are (7, TILE): components on sublanes, poses on lanes.
    # Cast to f32 in-kernel (free on the VPU; keeps HBM traffic at source dtype).
    pred = pred_ref[...].astype(jnp.float32)
    truth = truth_ref[...].astype(jnp.float32)

    # ---- position distance (static sublane slices) ---------------------------
    dpos = pred[0:3, :] - truth[0:3, :]                                  # (3, T)
    if distance_metric == 'l2':
        pos_dist = jnp.sqrt(jnp.sum(dpos * dpos, axis=0, keepdims=True) + epsilon)
    elif distance_metric == 'l1':
        pos_dist = jnp.sum(jnp.abs(dpos), axis=0, keepdims=True)
    elif distance_metric == 'linf':
        pos_dist = jnp.max(jnp.abs(dpos), axis=0, keepdims=True)
    else:  # 'combined'
        adiff = jnp.abs(dpos)
        pos_dist = (jnp.sqrt(jnp.sum(dpos * dpos, axis=0, keepdims=True) + epsilon)
                    + jnp.sum(adiff, axis=0, keepdims=True)
                    + jnp.max(adiff, axis=0, keepdims=True))             # (1, T)

    per_lane = pos_dist

    # ---- orientation distance ('pose' mode), rsqrt-multiply normalization ----
    if mode == 'pose':
        p_ori = pred[3:7, :]                                             # (4, T)
        t_ori = truth[3:7, :]
        # NOTE: zero-norm quats (incl. garbage/padded lanes) give inf/NaN here,
        # matching the reference's own divide-by-zero; the lane mask below
        # *selects* 0.0 for invalid lanes before any reduction, so NaN never
        # propagates into the partial sum.
        inv_mag = lax.rsqrt(jnp.sum(p_ori * p_ori, axis=0, keepdims=True))  # (1, T)
        inner = jnp.sum(p_ori * t_ori, axis=0, keepdims=True) * inv_mag     # (1, T)
        w_n = pred[6:7, :] * inv_mag                                        # (1, T)
        ori_term = (1.0 - inner * inner) + jnp.maximum(-w_n, 0.0)
        per_lane = per_lane + alpha * ori_term

    # ---- mask invalid lanes, reduce to a per-tile partial sum ----------------
    lane = pl.program_id(0) * tile_n + lax.broadcasted_iota(
        jnp.int32, (1, tile_n), 1)
    masked = jnp.where(lane < n_valid, per_lane, 0.0)
    tile_sum = jnp.sum(masked, axis=1, keepdims=True)                    # (1, 1)

    # Lane-dense (1, 128) output block: partial sum in lane 0, zeros elsewhere.
    out_lane = lax.broadcasted_iota(jnp.int32, (1, 128), 1)
    out_ref[...] = jnp.where(out_lane == 0, tile_sum, 0.0)


def pose_distance_loss(prediction, truth, *, distance_metric='l2',
                       scale_factor=1.0, alpha=1.0, epsilon=1e-4, mode='pose',
                       tile_n=65536):
    """JAX/Pallas equivalent of PoseDistanceLoss.forward ('pose'/'position' modes)."""
    if distance_metric not in ('l1', 'l2', 'linf', 'combined'):
        raise ValueError(f'invalid distance_metric: {distance_metric}')
    if mode not in ('position', 'pose'):
        # TODO(synk): 'val' mode (host-side numpy quat->axis-angle loop) has no clean Pallas equivalent.
        raise NotImplementedError(f'mode {mode!r} not supported by the Pallas kernel')

    # Keep native dtype -- no wrapper upcast pass; cast happens in-kernel.
    pred2d = prediction.reshape(-1, 7)
    truth2d = truth.reshape(-1, 7)
    n = pred2d.shape[0]

    # Lane-dense (7, N) layout. The transpose is the only extra HBM pass; the
    # pad only rounds N up to the next 128-lane boundary and fuses with it.
    # TODO(synk): if the producer can store poses as (7, N) (or a packed
    # (16, N) pred+truth slab) upstream, feed them in directly and drop this pass.
    n128 = ((n + 127) // 128) * 128
    pred_t = jnp.pad(pred2d.T, ((0, 0), (0, n128 - n)))
    truth_t = jnp.pad(truth2d.T, ((0, 0), (0, n128 - n)))

    # Tile selection: large lane tiles amortize the ~0.35us per-grid-step
    # overhead (~1.8 MB per f32 input block at 64K lanes). If a single tile
    # would cover the whole input, split it in two so the "parallel" grid axis
    # can shard across v7x's two TensorCores.
    tile_n = max(128, (min(int(tile_n), n128) // 128) * 128)
    if n128 >= 4096 and tile_n >= n128:
        tile_n = ((n128 // 2 + 127) // 128) * 128
    num_tiles = pl.cdiv(n128, tile_n)

    kernel = functools.partial(
        _pose_loss_kernel, epsilon=float(epsilon), alpha=float(alpha),
        n_valid=n, tile_n=tile_n, distance_metric=distance_metric, mode=mode)

    partials = pl.pallas_call(
        kernel,
        out_shape=jax.ShapeDtypeStruct((1, 128 * num_tiles), jnp.float32),
        grid=(num_tiles,),
        in_specs=[pl.BlockSpec((7, tile_n), lambda i: (0, i)),
                  pl.BlockSpec((7, tile_n), lambda i: (0, i))],
        out_specs=pl.BlockSpec((1, 128), lambda i: (0, i)),
        compiler_params=pltpu.CompilerParams(
            dimension_semantics=("parallel",),
            vmem_limit_bytes=40 * 1024 * 1024),
    )(pred_t, truth_t)

    # Tiny final reduction over num_tiles partial sums (per-pose losses are
    # never written back to HBM).
    return scale_factor * jnp.sum(partials)


def _reference(prediction, truth, epsilon=1e-4, scale_factor=1.0, alpha=1.0):
    p = prediction.reshape(-1, 7).astype(jnp.float32)
    t = truth.reshape(-1, 7).astype(jnp.float32)
    p_pos, p_ori = p[:, :3], p[:, 3:]
    t_pos, t_ori = t[:, :3], t[:, 3:]
    p_ori = p_ori / jnp.sqrt(jnp.sum(p_ori ** 2, axis=-1, keepdims=True))
    pos_dist = jnp.sum(jnp.sqrt(jnp.sum((p_pos - t_pos) ** 2, axis=-1) + epsilon))
    inner = jnp.sum(p_ori * t_ori, axis=-1)
    ori = jnp.sum(1.0 - inner ** 2) + jnp.sum(jnp.maximum(-p_ori[:, -1], 0.0))
    return scale_factor * (pos_dist + alpha * ori)


if __name__ == "__main__":
    key = jax.random.PRNGKey(0)
    k1, k2, k3 = jax.random.split(key, 3)

    B, S = 2, 8  # prediction/truth shape (B, S, 7)
    prediction = jax.random.normal(k1, (B, S, 7), dtype=jnp.float32)

    # Truth: random positions + normalized quaternion with positive w.
    true_pos = jax.random.normal(k2, (B, S, 3), dtype=jnp.float32)
    raw_q = jax.random.normal(k3, (B, S, 4), dtype=jnp.float32)
    raw_q = raw_q / jnp.linalg.norm(raw_q, axis=-1, keepdims=True)
    raw_q = raw_q * jnp.sign(raw_q[..., -1:])  # positive w
    truth = jnp.concatenate([true_pos, raw_q], axis=-1)

    loss = pose_distance_loss(prediction, truth)
    loss = jax.block_until_ready(loss)

    ref = _reference(prediction, truth)
    assert jnp.allclose(loss, ref, rtol=1e-5, atol=1e-5), (loss, ref)
    print("KERNEL_OK")
</pallas_src>

<mosaic_0001>
module attributes {stable_mosaic.version = 11 : i64} {
  func.func @_pose_loss_kernel(%arg0: i32, %arg1: memref<7x128xf32, #tpu.memory_space<vmem>>, %arg2: memref<7x128xf32, #tpu.memory_space<vmem>>, %arg3: memref<1x128xf32, #tpu.memory_space<vmem>>) attributes {dimension_semantics = [#tpu.dimension_semantics<parallel>], iteration_bounds = array<i64: 1>, scalar_prefetch = 0 : i64, scratch_operands = 0 : i64, tpu.core_type = #tpu.core_type<tc>, window_params = [{transform_indices = @transform_0, window_bounds = array<i64: 7, 128>}, {transform_indices = @transform_1, window_bounds = array<i64: 7, 128>}, {transform_indices = @transform_2, window_bounds = array<i64: 1, 128>}]} {
    %c0 = arith.constant 0 : index
    %c0_0 = arith.constant 0 : index
    %0 = vector.load %arg1[%c0, %c0_0] : memref<7x128xf32, #tpu.memory_space<vmem>>, vector<7x128xf32>
    %c0_1 = arith.constant 0 : index
    %c0_2 = arith.constant 0 : index
    %1 = vector.load %arg2[%c0_1, %c0_2] : memref<7x128xf32, #tpu.memory_space<vmem>>, vector<7x128xf32>
    %2 = vector.extract_strided_slice %0 {offsets = [0, 0], sizes = [3, 128], strides = [1, 1]} : vector<7x128xf32> to vector<3x128xf32>
    %3 = vector.extract_strided_slice %1 {offsets = [0, 0], sizes = [3, 128], strides = [1, 1]} : vector<7x128xf32> to vector<3x128xf32>
    %4 = arith.subf %2, %3 : vector<3x128xf32>
    %5 = arith.mulf %4, %4 : vector<3x128xf32>
    %cst = arith.constant dense<0.000000e+00> : vector<128xf32>
    %6 = vector.multi_reduction <add>, %5, %cst [0] : vector<3x128xf32> to vector<128xf32>
    %7 = vector.shape_cast %6 : vector<128xf32> to vector<1x128xf32>
    %cst_3 = arith.constant 9.99999974E-5 : f32
    %8 = vector.broadcast %cst_3 : f32 to vector<1x128xf32>
    %9 = arith.addf %7, %8 : vector<1x128xf32>
    %10 = math.sqrt %9 : vector<1x128xf32>
    %11 = vector.extract_strided_slice %0 {offsets = [3, 0], sizes = [4, 128], strides = [1, 1]} : vector<7x128xf32> to vector<4x128xf32>
    %12 = vector.extract_strided_slice %1 {offsets = [3, 0], sizes = [4, 128], strides = [1, 1]} : vector<7x128xf32> to vector<4x128xf32>
    %13 = arith.mulf %11, %11 : vector<4x128xf32>
    %cst_4 = arith.constant dense<0.000000e+00> : vector<128xf32>
    %14 = vector.multi_reduction <add>, %13, %cst_4 [0] : vector<4x128xf32> to vector<128xf32>
    %15 = vector.shape_cast %14 : vector<128xf32> to vector<1x128xf32>
    %16 = math.rsqrt %15 : vector<1x128xf32>
    %17 = arith.mulf %11, %12 : vector<4x128xf32>
    %cst_5 = arith.constant dense<0.000000e+00> : vector<128xf32>
    %18 = vector.multi_reduction <add>, %17, %cst_5 [0] : vector<4x128xf32> to vector<128xf32>
    %19 = vector.shape_cast %18 : vector<128xf32> to vector<1x128xf32>
    %20 = arith.mulf %19, %16 : vector<1x128xf32>
    %21 = vector.extract_strided_slice %0 {offsets = [6, 0], sizes = [1, 128], strides = [1, 1]} : vector<7x128xf32> to vector<1x128xf32>
    %22 = arith.mulf %21, %16 : vector<1x128xf32>
    %23 = arith.mulf %20, %20 : vector<1x128xf32>
    %cst_6 = arith.constant 1.000000e+00 : f32
    %24 = vector.broadcast %cst_6 : f32 to vector<1x128xf32>
    %25 = arith.subf %24, %23 : vector<1x128xf32>
    %cst_7 = arith.constant 0.000000e+00 : f32
    %26 = vector.broadcast %cst_7 : f32 to vector<1x128xf32>
    %27 = arith.subf %26, %22 : vector<1x128xf32>
    %cst_8 = arith.constant 0.000000e+00 : f32
    %28 = vector.broadcast %cst_8 : f32 to vector<1x128xf32>
    %29 = arith.maximumf %27, %28 : vector<1x128xf32>
    %30 = arith.addf %25, %29 : vector<1x128xf32>
    %cst_9 = arith.constant 1.000000e+00 : f32
    %31 = vector.broadcast %cst_9 : f32 to vector<1x128xf32>
    %32 = arith.mulf %31, %30 : vector<1x128xf32>
    %33 = arith.addf %10, %32 : vector<1x128xf32>
    %c128_i32 = arith.constant 128 : i32
    %34 = arith.muli %arg0, %c128_i32 : i32
    %35 = tpu.iota {dimensions = array<i32: 1>} : vector<1x128xi32>
    %36 = vector.broadcast %34 : i32 to vector<1x128xi32>
    %37 = arith.addi %36, %35 : vector<1x128xi32>
    %c16_i32 = arith.constant 16 : i32
    %38 = vector.broadcast %c16_i32 : i32 to vector<1x128xi32>
    %39 = arith.cmpi slt, %37, %38 : vector<1x128xi32>
    %cst_10 = arith.constant 0.000000e+00 : f32
    %40 = vector.broadcast %cst_10 : f32 to vector<1x128xf32>
    %41 = arith.select %39, %33, %40 : vector<1x128xi1>, vector<1x128xf32>
    %cst_11 = arith.constant dense<0.000000e+00> : vector<1xf32>
    %42 = vector.multi_reduction <add>, %41, %cst_11 [1] : vector<1x128xf32> to vector<1xf32>
    %43 = vector.shape_cast %42 : vector<1xf32> to vector<1x1xf32>
    %44 = tpu.iota {dimensions = array<i32: 1>} : vector<1x128xi32>
    %c0_i32 = arith.constant 0 : i32
    %45 = vector.broadcast %c0_i32 : i32 to vector<1x128xi32>
    %46 = arith.cmpi eq, %44, %45 : vector<1x128xi32>
    %cst_12 = arith.constant 0.000000e+00 : f32
    %47 = vector.shape_cast %43 : vector<1x1xf32> to vector<1x1xf32>
    %48 = vector.broadcast %47 : vector<1x1xf32> to vector<1x128xf32>
    %49 = vector.broadcast %cst_12 : f32 to vector<1x128xf32>
    %50 = arith.select %46, %48, %49 : vector<1x128xi1>, vector<1x128xf32>
    %c0_13 = arith.constant 0 : index
    %c0_14 = arith.constant 0 : index
    %51 = vector.load %arg3[%c0_13, %c0_14] : memref<1x128xf32, #tpu.memory_space<vmem>>, vector<1x128xf32>
    tpu.vector_store %arg3[%c0_13, %c0_14], %50 {strides = array<i32>} : memref<1x128xf32, #tpu.memory_space<vmem>>, vector<1x128xf32>,
    return
  }
  func.func @transform_0(%arg0: i32) -> (i32, i32) {
    %c0_i32 = arith.constant 0 : i32
    %c0_i32_0 = arith.constant 0 : i32
    return %c0_i32, %arg0 : i32, i32
  }
  func.func @transform_1(%arg0: i32) -> (i32, i32) {
    %c0_i32 = arith.constant 0 : i32
    %c0_i32_0 = arith.constant 0 : i32
    return %c0_i32, %arg0 : i32, i32
  }
  func.func @transform_2(%arg0: i32) -> (i32, i32) {
    %c0_i32 = arith.constant 0 : i32
    %c0_i32_0 = arith.constant 0 : i32
    return %c0_i32, %arg0 : i32, i32
  }
}

</mosaic_0001>

<llo_original>
// kernel: tpu_custom_call.1
$region0: #{tpu_custom_call.1}
  #allocation0 [shape = 'u32[]', space=smem, size = 0x4, offset = 0x4, fixed_abs, tag = 'smem constant byte address 0x4 - core index']
  #allocation1 [shape = 'u32[72,128]{1,0:T(1,128)}', space=vmem, size = 0x9000, scoped, tag = 'internal scratch']
  %s0 = inlined_call_operand.hbm [shape: f32[7,128], index: 0, kind: input, shape index: {}]
  %s1 = inlined_call_operand.hbm [shape: f32[7,128], index: 1, kind: input, shape index: {}]
  %s2 = inlined_call_operand.hbm [shape: f32[1,128], index: 2, kind: output, shape index: {}]
  %s3 = sld [smem:[#allocation0]]
  $region26: #{tpu_custom_call.1} parent=0
    _
  %s5 = ssub.s32 1, %s3
  %s6 = scalar_select 0, %s5, %s3
  $region1: #{tpu_custom_call.1} parent=0
    #allocation2 [shape = 'u8[4096]{0}', space=vmem, size = 0x1000, scoped, tag = 'input window, operand 0, single buffered']
    #allocation3 [shape = 's32[1]{0}', space=sflag, size = 0x4, scoped, tag = 'scoped memory for tpu_custom_call.1']
    #allocation4 [shape = 's32[1]{0}', space=sflag, size = 0x4, scoped, tag = 'scoped memory for tpu_custom_call.1']
    #allocation5 [shape = 'u8[4096]{0}', space=vmem, size = 0x1000, scoped, tag = 'input window, operand 1, single buffered']
    #allocation6 [shape = 's32[1]{0}', space=sflag, size = 0x4, scoped, tag = 'scoped memory for tpu_custom_call.1']
    #allocation7 [shape = 'u8[512]{0}', space=vmem, size = 0x400, scoped, tag = 'output window, operand 0, single buffered']
    %7 = vsyncpa [#allocation3], 0
    %8 = vsyncpa [#allocation6], 0
    %9 = vsyncpa [#allocation4], 0
    // Predicated region
    $region2: #{tpu_custom_call.1} parent=1 // pred_check
      _
    $region3: #{tpu_custom_call.1} parent=1 // pred_check_branch
      %11 = sbr.rel (0) target = $region5
    $region4: #{tpu_custom_call.1} parent=1 // pred_region
      %13 = vsyncadd [#allocation3], 0
      %s15 = sshll.u32 %s0, 4
      %s16 = int_to_ptr.hbm [resolvable:$true] %s15
      %s17 = sshll.u32 [#allocation2], 4
      %s18 = int_to_ptr.vmem [resolvable:$true] %s17
      %20 = dma.hbm_to_vmem [thread:$0]  %s16, 128, %s18, [#allocation3]
    $region5: #{tpu_custom_call.1} parent=1 // pred_fallthru
      _
    // Predicated region
    $region6: #{tpu_custom_call.1} parent=1 // pred_check
      _
    $region7: #{tpu_custom_call.1} parent=1 // pred_check_branch
      %22 = sbr.rel (0) target = $region9
    $region8: #{tpu_custom_call.1} parent=1 // pred_region
      %24 = vsyncadd [#allocation6], 0
      %s26 = sshll.u32 %s1, 4
      %s27 = int_to_ptr.hbm [resolvable:$true] %s26
      %s28 = sshll.u32 [#allocation5], 4
      %s29 = int_to_ptr.vmem [resolvable:$true] %s28
      %31 = dma.hbm_to_vmem [thread:$0]  %s27, 128, %s29, [#allocation6]
    $region9: #{tpu_custom_call.1} parent=1 // pred_fallthru
      _
    // Predicated region
    $region10: #{tpu_custom_call.1} parent=1 // pred_check
      _
    $region11: #{tpu_custom_call.1} parent=1 // pred_check_branch
      %33 = sbr.rel (0) target = $region13
    $region12: #{tpu_custom_call.1} parent=1 // pred_region
      %35 = dma.done [#allocation3], 128
    $region13: #{tpu_custom_call.1} parent=1 // pred_fallthru
      _
    // Predicated region
    $region14: #{tpu_custom_call.1} parent=1 // pred_check
      _
    $region15: #{tpu_custom_call.1} parent=1 // pred_check_branch
      %37 = sbr.rel (0) target = $region17
    $region16: #{tpu_custom_call.1} parent=1 // pred_region
      %39 = dma.done [#allocation6], 128
    $region17: #{tpu_custom_call.1} parent=1 // pred_fallthru
      _
    %v40 = vld [vmem:[#allocation2] sm:$0x7f]
    %v41 = vld [vmem:[#allocation5] sm:$0x7f]
    %v42 = vsub.f32 %v40, %v41
    %v43 = vmul.f32 %v42, %v42
    %vm44 = vcmask 1042432
    %v45 = vsel %vm44, %v43, 0.0
    %v46 = vrot.slane %v45, 4
    %v47 = vadd.f32 %v45, %v46
    %v48 = vrot.slane %v47, 2
    %v49 = vadd.f32 %v47, %v48
    %v50 = vrot.slane %v49, 1
    %v51 = vadd.f32 %v49, %v50
    %v52 = vadd.f32 %v51, 0.0001
    %v53 = vrsqrt.pop %v52
    %v54 = vmul.f32 %v53, %v52
    %v55 = vmul.f32 %v54, %v53
    %v56 = vmul.f32 0.5, %v55
    %v57 = vsub.f32 1.5, %v56
    %v58 = vmul.f32 %v53, %v57
    %v59 = vmul.f32 %v52, %v58
    %vm60 = vcmp.eq.f32.partialorder %v52, inf
    %v61 = vsel %vm60, %v52, %v59
    %vm62 = vcmp.eq.f32.partialorder %v52, 0.0
    %v63 = vand.u32 %v52, 2147483648
    %v64 = vsel %vm62, %v63, %v61
    %v65 = vmul.f32 %v40, %v40
    %v67 = vrot.slane %v65, 3
    %vm69 = vcmask 1043456
    %v70 = vsel %vm69, %v67, 0.0
    %v71 = vrot.slane %v70, 4
    %v72 = vadd.f32 %v70, %v71
    %v73 = vrot.slane %v72, 2
    %v74 = vadd.f32 %v72, %v73
    %v75 = vrot.slane %v74, 1
    %v76 = vadd.f32 %v74, %v75
    %v77 = vrsqrt.pop %v76
    %v78 = vmul.f32 %v77, %v76
    %v79 = vmul.f32 %v78, %v77
    %v80 = vmul.f32 0.5, %v79
    %v81 = vsub.f32 1.5, %v80
    %v82 = vmul.f32 %v77, %v81
    %vm83 = vweird.f32 %v76
    %vm84 = vweird.f32 %v77
    %vm85 = vmor %vm83, %vm84
    %v86 = vsel %vm85, %v77, %v82
    %v87 = vmul.f32 %v40, %v41
    %v89 = vrot.slane %v87, 3
    %v91 = vsel %vm69, %v89, 0.0
    %v92 = vrot.slane %v91, 4
    %v93 = vadd.f32 %v91, %v92
    %v94 = vrot.slane %v93, 2
    %v95 = vadd.f32 %v93, %v94
    %v96 = vrot.slane %v95, 1
    %v97 = vadd.f32 %v95, %v96
    %v98 = vmul.f32 %v97, %v86
    %v99 = vmul.f32 %v40, %v86
    %v100 = vmul.f32 %v98, %v98
    %v101 = vsub.f32 1.0, %v100
    %v102 = vsub.f32 0.0, %v99
    %v103 = vmax.f32 %v102, 0.0
    %v104 = vadd.f32 %v101, %v103
    %v105 = vadd.f32 %v64, %v104
    %s106 = smul.u32 0, 128
    %v107 = vlaneseq
    %v108 = vand.u32 %v107, 127
    %v109 = vstv %s106
    %v110 = vadd.s32 %v109, %v108
    %vm111 = vcmp.lt.s32.totalorder %v110, 16
    %v112 = vsel %vm111, %v105, 0.0
    %vm113 = vcmask 1046534
    %v114 = vsel %vm113, %v112, 0.0
    %115 = vadd.xlane.f32.xlu0 %v114
    %v116 = vpop.xlane.xlu0 %115
    %vm117 = vcmp.eq.s32.totalorder %v108, 0
    %v118 = vsel %vm117, %v116, 0.0
    %119 = vst [vmem:[#allocation7 - $0x6] sm:$0x40] %v118
    // Predicated region
    $region18: #{tpu_custom_call.1} parent=1 // pred_check
      _
    $region19: #{tpu_custom_call.1} parent=1 // pred_check_branch
      %121 = sbr.rel (0) target = $region21
    $region20: #{tpu_custom_call.1} parent=1 // pred_region
      %123 = vsyncadd [#allocation4], 0
      %s125 = sshll.u32 [#allocation7], 4
      %s126 = int_to_ptr.vmem [resolvable:$true] %s125
      %s127 = sshll.u32 %s2, 4
      %s128 = int_to_ptr.hbm [resolvable:$true] %s127
      %130 = dma.vmem_to_hbm [thread:$0]  %s126, 16, %s128, [#allocation4]
    $region21: #{tpu_custom_call.1} parent=1 // pred_fallthru
      _
    // Predicated region
    $region22: #{tpu_custom_call.1} parent=1 // pred_check
      _
    $region23: #{tpu_custom_call.1} parent=1 // pred_check_branch
      %132 = sbr.rel (0) target = $region25
    $region24: #{tpu_custom_call.1} parent=1 // pred_region
      %134 = dma.done [#allocation4], 16
    $region25: #{tpu_custom_call.1} parent=1 // pred_fallthru
      _
    %135 = vsyncpa [#allocation3], 1
    %136 = vsyncpa [#allocation6], 1
    %137 = vsyncpa [#allocation4], 1

</llo_original>
